<compile_context>
chip_gen: v6e
topology: v6e:2x2x1
jax: 0.10.0
libtpu: 0.0.40
codegen_flags: <defaults>
</compile_context>

<pallas_src>
import functools

import jax
import jax.numpy as jnp
from jax.experimental import pallas as pl
from jax.experimental.pallas import tpu as pltpu


def _cdiv(a: int, b: int) -> int:
    return (a + b - 1) // b


def _round_up(x: int, m: int) -> int:
    return (x + m - 1) // m * m


# ------------------------------------------------------------------------------------------
# Kernel
# ------------------------------------------------------------------------------------------
def _mm_teacher_kernel(
    x_ref,            # [tile_b, D_t1 + D_snp]  streamed activations
    w1_ref, b1_ref,   # [Dcat, H1+H2], [1, H1+H2]   (block-diagonal first layers)
    w2_ref, b2_ref,   # [H1+H2, F1+F2], [1, F1+F2]  (block-diagonal second layers)
    rw_ref, rb_ref,   # [F1+F2, O], [1, O]          (regressor head)
    out_ref,          # [tile_b, F1+F2+O]  fused output slab: [feat | logits/logprobs]
    *, task: str,
):
    # Layer 1 (both branches at once, block-diag weights), f32 accumulation, f32 ReLU.
    h = jnp.dot(x_ref[...], w1_ref[...], preferred_element_type=jnp.float32) + b1_ref[...]
    h = jnp.maximum(h, 0.0)

    # Layer 2 -> concatenated features [tile_b, F1+F2].
    feat = jnp.dot(h.astype(w2_ref.dtype), w2_ref[...],
                   preferred_element_type=jnp.float32) + b2_ref[...]

    # Regressor head on the (implicitly concatenated) features.
    logits = jnp.dot(feat.astype(rw_ref.dtype), rw_ref[...],
                     preferred_element_type=jnp.float32) + rb_ref[...]

    if task == "classification":
        # Numerically stable LogSoftmax(dim=1), all in f32.
        m = jnp.max(logits, axis=-1, keepdims=True)
        z = logits - m
        lse = jnp.log(jnp.sum(jnp.exp(z), axis=-1, keepdims=True))
        out = z - lse
    else:  # regression
        out = logits

    # Single unmasked store of the fused slab (lane concat rides the XLU slot).
    out_ref[...] = jnp.concatenate([feat, out], axis=-1).astype(out_ref.dtype)


# ------------------------------------------------------------------------------------------
# Parameter packing (hoisted out of the per-call path — do this once per parameter set)
# ------------------------------------------------------------------------------------------
def pack_mm_teacher_params(params, *, use_bf16: bool = False):
    """Pack the two MLP branches into block-diagonal weights + fused biases.

    params: dict with keys
      t1_w1 [D_t1,H1], t1_b1 [1,H1], t1_w2 [H1,F1], t1_b2 [1,F1],
      snp_w1 [D_snp,H2], snp_b1 [1,H2], snp_w2 [H2,F2], snp_b2 [1,F2],
      reg_w [F1+F2, O], reg_b [1,O]
    """
    d1, h1 = params["t1_w1"].shape
    d2, h2 = params["snp_w1"].shape
    f1 = params["t1_w2"].shape[1]
    f2 = params["snp_w2"].shape[1]
    out_dim = params["reg_w"].shape[1]

    mm_dtype = jnp.bfloat16 if use_bf16 else jnp.float32

    w1 = jnp.zeros((d1 + d2, h1 + h2), jnp.float32)
    w1 = w1.at[:d1, :h1].set(params["t1_w1"]).at[d1:, h1:].set(params["snp_w1"])
    w2 = jnp.zeros((h1 + h2, f1 + f2), jnp.float32)
    w2 = w2.at[:h1, :f1].set(params["t1_w2"]).at[h1:, f1:].set(params["snp_w2"])
    b1 = jnp.concatenate([params["t1_b1"], params["snp_b1"]], axis=1).astype(jnp.float32)
    b2 = jnp.concatenate([params["t1_b2"], params["snp_b2"]], axis=1).astype(jnp.float32)

    packed = {
        "w1": w1.astype(mm_dtype),
        "b1": b1,
        "w2": w2.astype(mm_dtype),
        "b2": b2,
        "rw": params["reg_w"].astype(mm_dtype),
        "rb": params["reg_b"].astype(jnp.float32),
    }
    dims = dict(d1=d1, d2=d2, h1=h1, h2=h2, f1=f1, f2=f2, out_dim=out_dim)
    return packed, dims, mm_dtype


# ------------------------------------------------------------------------------------------
# Forward wrapper
# ------------------------------------------------------------------------------------------
def multi_modal_teacher_packed(t1_data, snp_data, packed, dims, mm_dtype, *,
                               task="classification", tile_b_max=4096,
                               bf16_out=False):
    B = t1_data.shape[0]
    d1, d2 = dims["d1"], dims["d2"]
    h1, h2 = dims["h1"], dims["h2"]
    f1, f2 = dims["f1"], dims["f2"]
    out_dim = dims["out_dim"]

    d_cat, h_cat, ff = d1 + d2, h1 + h2, f1 + f2
    slab_w = ff + out_dim

    use_bf16 = (mm_dtype == jnp.bfloat16)
    out_dtype = jnp.bfloat16 if bf16_out else jnp.float32

    # --- Batch tiling -------------------------------------------------------------------
    # Never pad by more than one sublane granule per tile; bf16 packs 16 sublanes per vreg.
    row_granule = 16 if use_bf16 else 8
    n_tiles = _cdiv(B, int(tile_b_max))
    # Keep >= 2 grid steps for large single-tile batches so v7x's 2 TensorCores both get
    # work (the batch axis is the only "parallel" axis). Harmless on v5e/v6e (1 TC).
    if n_tiles == 1 and B >= 1024:
        n_tiles = 2
    tile_b = _round_up(_cdiv(B, n_tiles), row_granule)
    b_pad = n_tiles * tile_b

    x_cat = jnp.concatenate([t1_data, snp_data], axis=1).astype(mm_dtype)
    if b_pad != B:
        x_cat = jnp.pad(x_cat, ((0, b_pad - B), (0, 0)))
    grid = (n_tiles,)

    # Streamed activations / outputs: block over batch. Weights/biases: resident (block 0).
    x_spec = pl.BlockSpec((tile_b, d_cat), lambda i: (i, 0))
    out_spec = pl.BlockSpec((tile_b, slab_w), lambda i: (i, 0))

    def resident(shape):
        return pl.BlockSpec(shape, lambda i: (0, 0))

    in_specs = [
        x_spec,
        resident((d_cat, h_cat)), resident((1, h_cat)),
        resident((h_cat, ff)), resident((1, ff)),
        resident((ff, out_dim)), resident((1, out_dim)),
    ]
    inputs = (x_cat, packed["w1"], packed["b1"], packed["w2"], packed["b2"],
              packed["rw"], packed["rb"])

    flops = 2 * b_pad * (d_cat * h_cat + h_cat * ff + ff * out_dim)
    transcendentals = b_pad * (out_dim + 1) if task == "classification" else 0
    bytes_accessed = sum(int(a.size) * a.dtype.itemsize for a in inputs) \
        + b_pad * slab_w * jnp.dtype(out_dtype).itemsize

    slab = pl.pallas_call(
        functools.partial(_mm_teacher_kernel, task=task),
        grid=grid,
        in_specs=in_specs,
        out_specs=out_spec,
        out_shape=jax.ShapeDtypeStruct((b_pad, slab_w), out_dtype),
        compiler_params=pltpu.CompilerParams(dimension_semantics=("parallel",)),
        cost_estimate=pl.CostEstimate(flops=flops,
                                      transcendentals=transcendentals,
                                      bytes_accessed=bytes_accessed),
    )(*inputs)

    feat = slab[:B, :ff]
    out = slab[:B, ff:]
    return out, feat[:, :f1], feat[:, f1:]


def multi_modal_teacher(t1_data, snp_data, params, *, task="classification",
                        tile_b_max=4096, use_bf16=False, bf16_out=False):
    """Convenience entry point: packs parameters and runs the kernel.

    For repeated calls with the same parameters, call pack_mm_teacher_params once and use
    multi_modal_teacher_packed directly (avoids re-dispatching the packing ops per forward).
    Returns (out [B,O], t1_features [B,F1], snp_features [B,F2]).
    """
    packed, dims, mm_dtype = pack_mm_teacher_params(params, use_bf16=use_bf16)
    return multi_modal_teacher_packed(t1_data, snp_data, packed, dims, mm_dtype,
                                      task=task, tile_b_max=tile_b_max, bf16_out=bf16_out)


# ------------------------------------------------------------------------------------------
# Pure-JAX reference + self-test
# ------------------------------------------------------------------------------------------
def _reference(t1_data, snp_data, params, task):
    t1_h = jnp.maximum(t1_data @ params["t1_w1"] + params["t1_b1"], 0.0)
    t1_f = t1_h @ params["t1_w2"] + params["t1_b2"]
    snp_h = jnp.maximum(snp_data @ params["snp_w1"] + params["snp_b1"], 0.0)
    snp_f = snp_h @ params["snp_w2"] + params["snp_b2"]
    feats = jnp.concatenate([t1_f, snp_f], axis=1)
    logits = feats @ params["reg_w"] + params["reg_b"]
    out = jax.nn.log_softmax(logits, axis=1) if task == "classification" else logits
    return out, t1_f, snp_f


if __name__ == "__main__":
    # Small deterministic config.
    D_T1, H_T1, F_T1 = 32, 32, 16     # t1_net:  MLP(d_in=32, d_layers=[32], d_out=16)
    D_SNP, H_SNP, F_SNP = 32, 32, 16  # snp_net: MLP(d_in=32, d_layers=[32], d_out=16)
    OUT_DIM = 8

    key = jax.random.PRNGKey(0)
    ks = jax.random.split(key, 12)

    def init(k, shape, scale=0.1):
        return (scale * jax.random.normal(k, shape)).astype(jnp.float32)

    params = {
        "t1_w1": init(ks[0], (D_T1, H_T1)),
        "t1_b1": init(ks[1], (1, H_T1)),
        "t1_w2": init(ks[2], (H_T1, F_T1)),
        "t1_b2": init(ks[3], (1, F_T1)),
        "snp_w1": init(ks[4], (D_SNP, H_SNP)),
        "snp_b1": init(ks[5], (1, H_SNP)),
        "snp_w2": init(ks[6], (H_SNP, F_SNP)),
        "snp_b2": init(ks[7], (1, F_SNP)),
        "reg_w": init(ks[8], (F_T1 + F_SNP, OUT_DIM)),
        "reg_b": init(ks[9], (1, OUT_DIM)),
    }

    # Pack once per (params, dtype) — hoisted out of the per-call path.
    packed_f32, dims, dt_f32 = pack_mm_teacher_params(params, use_bf16=False)
    packed_bf16, _, dt_bf16 = pack_mm_teacher_params(params, use_bf16=True)

    def check(B, task, use_bf16, tol, tile_b_max=4096, bf16_out=False):
        kt, kv = jax.random.split(jax.random.fold_in(ks[10], B + (1 if use_bf16 else 0)))
        t1 = jax.random.normal(kt, (B, D_T1), jnp.float32)
        snp = jax.random.normal(kv, (B, D_SNP), jnp.float32)
        packed = packed_bf16 if use_bf16 else packed_f32
        dt = dt_bf16 if use_bf16 else dt_f32
        out, f1, f2 = multi_modal_teacher_packed(
            t1, snp, packed, dims, dt, task=task, tile_b_max=tile_b_max, bf16_out=bf16_out)
        jax.block_until_ready((out, f1, f2))
        out = out.astype(jnp.float32)
        f1 = f1.astype(jnp.float32)
        f2 = f2.astype(jnp.float32)
        r_out, r_f1, r_f2 = _reference(t1, snp, params, task)
        assert out.shape == r_out.shape and f1.shape == r_f1.shape and f2.shape == r_f2.shape
        assert jnp.allclose(out, r_out, atol=tol, rtol=tol)
        assert jnp.allclose(f1, r_f1, atol=tol, rtol=tol)
        assert jnp.allclose(f2, r_f2, atol=tol, rtol=tol)

    # Small batch, f32, classification + regression (single tile, no padding).
    check(B=8, task="classification", use_bf16=False, tol=1e-4)
    check(B=8, task="regression", use_bf16=False, tol=1e-4)
    # Larger, non-power-of-two batch: new tiling keeps it at a single 600-row tile (no pad).
    check(B=600, task="classification", use_bf16=False, tol=1e-4)
    # Multi-tile path: tile_b_max=256 -> 3 tiles of 200 rows, still zero padding.
    check(B=600, task="classification", use_bf16=False, tol=1e-4, tile_b_max=256)
    # bf16-streamed path (16-row granule -> 608 rows, 8 pad rows only).
    check(B=600, task="classification", use_bf16=True, tol=5e-2)
    # bf16 streaming + bf16 output slab (halved writeback traffic).
    check(B=600, task="classification", use_bf16=True, tol=5e-2, bf16_out=True)

    print("KERNEL_OK")
</pallas_src>

<mosaic_0001>
module attributes {stable_mosaic.version = 11 : i64} {
  func.func @_mm_teacher_kernel(%arg0: i32, %arg1: memref<8x64xf32, #tpu.memory_space<vmem>>, %arg2: memref<64x64xf32, #tpu.memory_space<vmem>>, %arg3: memref<1x64xf32, #tpu.memory_space<vmem>>, %arg4: memref<64x32xf32, #tpu.memory_space<vmem>>, %arg5: memref<1x32xf32, #tpu.memory_space<vmem>>, %arg6: memref<32x8xf32, #tpu.memory_space<vmem>>, %arg7: memref<1x8xf32, #tpu.memory_space<vmem>>, %arg8: memref<8x40xf32, #tpu.memory_space<vmem>>) attributes {dimension_semantics = [#tpu.dimension_semantics<parallel>], iteration_bounds = array<i64: 1>, scalar_prefetch = 0 : i64, scratch_operands = 0 : i64, tpu.core_type = #tpu.core_type<tc>, window_params = [{transform_indices = @transform_0, window_bounds = array<i64: 8, 64>}, {pipeline_mode = #tpu.pipeline_mode<synchronous>, transform_indices = @transform_1, window_bounds = array<i64: 64, 64>}, {pipeline_mode = #tpu.pipeline_mode<synchronous>, transform_indices = @transform_2, window_bounds = array<i64: 1, 64>}, {pipeline_mode = #tpu.pipeline_mode<synchronous>, transform_indices = @transform_3, window_bounds = array<i64: 64, 32>}, {pipeline_mode = #tpu.pipeline_mode<synchronous>, transform_indices = @transform_4, window_bounds = array<i64: 1, 32>}, {pipeline_mode = #tpu.pipeline_mode<synchronous>, transform_indices = @transform_5, window_bounds = array<i64: 32, 8>}, {pipeline_mode = #tpu.pipeline_mode<synchronous>, transform_indices = @transform_6, window_bounds = array<i64: 1, 8>}, {transform_indices = @transform_7, window_bounds = array<i64: 8, 40>}]} {
    %c0 = arith.constant 0 : index
    %c0_0 = arith.constant 0 : index
    %0 = vector.load %arg1[%c0, %c0_0] : memref<8x64xf32, #tpu.memory_space<vmem>>, vector<8x64xf32>
    %c0_1 = arith.constant 0 : index
    %c0_2 = arith.constant 0 : index
    %1 = vector.load %arg2[%c0_1, %c0_2] : memref<64x64xf32, #tpu.memory_space<vmem>>, vector<64x64xf32>
    %cst = arith.constant dense<0.000000e+00> : vector<8x64xf32>
    %2 = tpu.matmul %0, %1, %cst {dimension_numbers = #tpu.dot_dimension_numbers<[1], [0], [0], [1], [0, 0, 1, 1], [], []>} : vector<8x64xf32>, vector<64x64xf32>, vector<8x64xf32> -> vector<8x64xf32>
    %c0_3 = arith.constant 0 : index
    %c0_4 = arith.constant 0 : index
    %3 = vector.load %arg3[%c0_3, %c0_4] : memref<1x64xf32, #tpu.memory_space<vmem>>, vector<1x64xf32>
    %4 = vector.broadcast %3 : vector<1x64xf32> to vector<8x64xf32>
    %5 = arith.addf %2, %4 : vector<8x64xf32>
    %cst_5 = arith.constant 0.000000e+00 : f32
    %6 = vector.broadcast %cst_5 : f32 to vector<8x64xf32>
    %7 = arith.maximumf %5, %6 : vector<8x64xf32>
    %c0_6 = arith.constant 0 : index
    %c0_7 = arith.constant 0 : index
    %8 = vector.load %arg4[%c0_6, %c0_7] : memref<64x32xf32, #tpu.memory_space<vmem>>, vector<64x32xf32>
    %cst_8 = arith.constant dense<0.000000e+00> : vector<8x32xf32>
    %9 = tpu.matmul %7, %8, %cst_8 {dimension_numbers = #tpu.dot_dimension_numbers<[1], [0], [0], [1], [0, 0, 1, 1], [], []>} : vector<8x64xf32>, vector<64x32xf32>, vector<8x32xf32> -> vector<8x32xf32>
    %c0_9 = arith.constant 0 : index
    %c0_10 = arith.constant 0 : index
    %10 = vector.load %arg5[%c0_9, %c0_10] : memref<1x32xf32, #tpu.memory_space<vmem>>, vector<1x32xf32>
    %11 = vector.broadcast %10 : vector<1x32xf32> to vector<8x32xf32>
    %12 = arith.addf %9, %11 : vector<8x32xf32>
    %c0_11 = arith.constant 0 : index
    %c0_12 = arith.constant 0 : index
    %13 = vector.load %arg6[%c0_11, %c0_12] : memref<32x8xf32, #tpu.memory_space<vmem>>, vector<32x8xf32>
    %cst_13 = arith.constant dense<0.000000e+00> : vector<8x8xf32>
    %14 = tpu.matmul %12, %13, %cst_13 {dimension_numbers = #tpu.dot_dimension_numbers<[1], [0], [0], [1], [0, 0, 1, 1], [], []>} : vector<8x32xf32>, vector<32x8xf32>, vector<8x8xf32> -> vector<8x8xf32>
    %c0_14 = arith.constant 0 : index
    %c0_15 = arith.constant 0 : index
    %15 = vector.load %arg7[%c0_14, %c0_15] : memref<1x8xf32, #tpu.memory_space<vmem>>, vector<1x8xf32>
    %16 = vector.broadcast %15 : vector<1x8xf32> to vector<8x8xf32>
    %17 = arith.addf %14, %16 : vector<8x8xf32>
    %cst_16 = arith.constant dense<0xFF800000> : vector<8xf32>
    %18 = vector.multi_reduction <maximumf>, %17, %cst_16 [1] : vector<8x8xf32> to vector<8xf32>
    %19 = vector.shape_cast %18 : vector<8xf32> to vector<8x1xf32>
    %20 = vector.broadcast %19 : vector<8x1xf32> to vector<8x8xf32>
    %21 = arith.subf %17, %20 : vector<8x8xf32>
    %22 = math.exp %21 : vector<8x8xf32>
    %cst_17 = arith.constant dense<0.000000e+00> : vector<8xf32>
    %23 = vector.multi_reduction <add>, %22, %cst_17 [1] : vector<8x8xf32> to vector<8xf32>
    %24 = vector.shape_cast %23 : vector<8xf32> to vector<8x1xf32>
    %25 = math.log %24 : vector<8x1xf32>
    %26 = vector.broadcast %25 : vector<8x1xf32> to vector<8x8xf32>
    %27 = arith.subf %21, %26 : vector<8x8xf32>
    %28 = tpu.concatenate %12, %27 in 1 : vector<8x32xf32>, vector<8x8xf32> -> vector<8x40xf32>
    %c0_18 = arith.constant 0 : index
    %c0_19 = arith.constant 0 : index
    %29 = vector.load %arg8[%c0_18, %c0_19] : memref<8x40xf32, #tpu.memory_space<vmem>>, vector<8x40xf32>
    tpu.vector_store %arg8[%c0_18, %c0_19], %28 {strides = array<i32>} : memref<8x40xf32, #tpu.memory_space<vmem>>, vector<8x40xf32>,
    return
  }
  func.func @transform_0(%arg0: i32) -> (i32, i32) {
    %c0_i32 = arith.constant 0 : i32
    %c0_i32_0 = arith.constant 0 : i32
    return %arg0, %c0_i32 : i32, i32
  }
  func.func @transform_1(%arg0: i32) -> (i32, i32) {
    %c0_i32 = arith.constant 0 : i32
    %c0_i32_0 = arith.constant 0 : i32
    %c0_i32_1 = arith.constant 0 : i32
    return %c0_i32, %c0_i32_0 : i32, i32
  }
  func.func @transform_2(%arg0: i32) -> (i32, i32) {
    %c0_i32 = arith.constant 0 : i32
    %c0_i32_0 = arith.constant 0 : i32
    %c0_i32_1 = arith.constant 0 : i32
    return %c0_i32, %c0_i32_0 : i32, i32
  }
  func.func @transform_3(%arg0: i32) -> (i32, i32) {
    %c0_i32 = arith.constant 0 : i32
    %c0_i32_0 = arith.constant 0 : i32
    %c0_i32_1 = arith.constant 0 : i32
    return %c0_i32, %c0_i32_0 : i32, i32
  }
  func.func @transform_4(%arg0: i32) -> (i32, i32) {
    %c0_i32 = arith.constant 0 : i32
    %c0_i32_0 = arith.constant 0 : i32
    %c0_i32_1 = arith.constant 0 : i32
    return %c0_i32, %c0_i32_0 : i32, i32
  }
  func.func @transform_5(%arg0: i32) -> (i32, i32) {
    %c0_i32 = arith.constant 0 : i32
    %c0_i32_0 = arith.constant 0 : i32
    %c0_i32_1 = arith.constant 0 : i32
    return %c0_i32, %c0_i32_0 : i32, i32
  }
  func.func @transform_6(%arg0: i32) -> (i32, i32) {
    %c0_i32 = arith.constant 0 : i32
    %c0_i32_0 = arith.constant 0 : i32
    %c0_i32_1 = arith.constant 0 : i32
    return %c0_i32, %c0_i32_0 : i32, i32
  }
  func.func @transform_7(%arg0: i32) -> (i32, i32) {
    %c0_i32 = arith.constant 0 : i32
    %c0_i32_0 = arith.constant 0 : i32
    return %arg0, %c0_i32 : i32, i32
  }
}

</mosaic_0001>

<llo_original>
// kernel: tpu_custom_call.1
$region0: #{tpu_custom_call.1}
  #allocation0 [shape = 'u32[]', space=smem, size = 0x4, offset = 0x4, fixed_abs, tag = 'smem constant byte address 0x4 - core index']
  #allocation1 [shape = 'u32[144,128]{1,0:T(1,128)}', space=vmem, size = 0x12000, scoped, tag = 'internal scratch']
  %s0 = inlined_call_operand.vmem [shape: f32[8,64], index: 0, kind: input, shape index: {}]
  %s1 = inlined_call_operand.vmem [shape: f32[64,64], index: 1, kind: input, shape index: {}]
  %s2 = inlined_call_operand.vmem [shape: f32[1,64], index: 2, kind: input, shape index: {}]
  %s3 = inlined_call_operand.vmem [shape: f32[64,32], index: 3, kind: input, shape index: {}]
  %s4 = inlined_call_operand.vmem [shape: f32[1,32], index: 4, kind: input, shape index: {}]
  %s5 = inlined_call_operand.vmem [shape: f32[32,8], index: 5, kind: input, shape index: {}]
  %s6 = inlined_call_operand.vmem [shape: f32[1,8], index: 6, kind: input, shape index: {}]
  %s7 = inlined_call_operand.hbm [shape: f32[8,40], index: 7, kind: output, shape index: {}]
  %s8 = sld [smem:[#allocation0]]
  $region38: #{tpu_custom_call.1} parent=0
    _
  %s10 = ssub.s32 1, %s8
  %s11 = scalar_select 0, %s10, %s8
  $region1: #{tpu_custom_call.1} parent=0
    #allocation2 [shape = 'u8[4096]{0}', space=vmem, size = 0x1000, scoped, tag = 'output window, operand 0, single buffered']
    #allocation3 [shape = 's32[1]{0}', space=sflag, size = 0x4, scoped, tag = 'scoped memory for tpu_custom_call.1']
    %12 = vsyncpa [#allocation3], 0
    // Predicated region
    $region2: #{tpu_custom_call.1} parent=1 // pred_check
      _
    $region3: #{tpu_custom_call.1} parent=1 // pred_check_branch
      %14 = sbr.rel (0) target = $region5
    $region4: #{tpu_custom_call.1} parent=1 // pred_region
      _
    $region5: #{tpu_custom_call.1} parent=1 // pred_fallthru
      _
    // Predicated region
    $region6: #{tpu_custom_call.1} parent=1 // pred_check
      _
    $region7: #{tpu_custom_call.1} parent=1 // pred_check_branch
      %16 = sbr.rel (0) target = $region9
    $region8: #{tpu_custom_call.1} parent=1 // pred_region
      _
    $region9: #{tpu_custom_call.1} parent=1 // pred_fallthru
      _
    // Predicated region
    $region10: #{tpu_custom_call.1} parent=1 // pred_check
      _
    $region11: #{tpu_custom_call.1} parent=1 // pred_check_branch
      %18 = sbr.rel (0) target = $region13
    $region12: #{tpu_custom_call.1} parent=1 // pred_region
      _
    $region13: #{tpu_custom_call.1} parent=1 // pred_fallthru
      _
    // Predicated region
    $region14: #{tpu_custom_call.1} parent=1 // pred_check
      _
    $region15: #{tpu_custom_call.1} parent=1 // pred_check_branch
      %20 = sbr.rel (0) target = $region17
    $region16: #{tpu_custom_call.1} parent=1 // pred_region
      _
    $region17: #{tpu_custom_call.1} parent=1 // pred_fallthru
      _
    // Predicated region
    $region18: #{tpu_custom_call.1} parent=1 // pred_check
      _
    $region19: #{tpu_custom_call.1} parent=1 // pred_check_branch
      %22 = sbr.rel (0) target = $region21
    $region20: #{tpu_custom_call.1} parent=1 // pred_region
      _
    $region21: #{tpu_custom_call.1} parent=1 // pred_fallthru
      _
    // Predicated region
    $region22: #{tpu_custom_call.1} parent=1 // pred_check
      _
    $region23: #{tpu_custom_call.1} parent=1 // pred_check_branch
      %24 = sbr.rel (0) target = $region25
    $region24: #{tpu_custom_call.1} parent=1 // pred_region
      _
    $region25: #{tpu_custom_call.1} parent=1 // pred_fallthru
      _
    // Predicated region
    $region26: #{tpu_custom_call.1} parent=1 // pred_check
      _
    $region27: #{tpu_custom_call.1} parent=1 // pred_check_branch
      %26 = sbr.rel (0) target = $region29
    $region28: #{tpu_custom_call.1} parent=1 // pred_region
      _
    $region29: #{tpu_custom_call.1} parent=1 // pred_fallthru
      _
    %v27 = vld [vmem:[%s0] sm:$0xff]
    %v28 = vld [vmem:[%s1] sm:$0xff]
    %v29 = vld [vmem:[%s1 + $0x8] sm:$0xff]
    %v30 = vld [vmem:[%s1 + $0x10] sm:$0xff]
    %v31 = vld [vmem:[%s1 + $0x18] sm:$0xff]
    %v32 = vld [vmem:[%s1 + $0x20] sm:$0xff]
    %v33 = vld [vmem:[%s1 + $0x28] sm:$0xff]
    %v34 = vld [vmem:[%s1 + $0x30] sm:$0xff]
    %v35 = vld [vmem:[%s1 + $0x38] sm:$0xff]
    %v36 = vld [vmem:[%s2] sm:$0x1]
    %v38 = vlaneseq
    %v39 = vshrl.u32 %v38, 7
    %v40 = vsub.s32 0, %v39
    %v41 = vrot.slane %v36, %v40
    %vm43 = vcmask 523264
    %v45 = vsel %vm43, %v27, 0
    %47 = vmatprep.subr.mxu0 0.0
    %48 = vmatpush1.msra.mxu0 0.0
    %49 = vmatprep.subr.mxu0 0.0
    %50 = vmatpush1.msra.mxu0 0.0
    %51 = vmatprep.subr.mxu0 0.0
    %52 = vmatpush1.msra.mxu0 0.0
    %53 = vmatprep.subr.mxu0 0.0
    %54 = vmatpush1.msra.mxu0 0.0
    %55 = vmatprep.subr.mxu0 0.0
    %56 = vmatpush1.msra.mxu0 0.0
    %57 = vmatprep.subr.mxu0 0.0
    %58 = vmatpush1.msra.mxu0 0.0
    %59 = vmatprep.subr.mxu0 0.0
    %60 = vmatpush1.msra.mxu0 0.0
    %61 = vmatprep.subr.mxu0 0.0
    %62 = vmatpush1.msra.mxu0 0.0
    %63 = vmatprep.subr.mxu0 0.0
    %64 = vmatpush1.msra.mxu0 %v35
    %65 = vmatprep.subr.mxu0 0.0
    %66 = vmatpush1.msra.mxu0 %v34
    %67 = vmatprep.subr.mxu0 0.0
    %68 = vmatpush1.msra.mxu0 %v33
    %69 = vmatprep.subr.mxu0 0.0
    %70 = vmatpush1.msra.mxu0 %v32
    %71 = vmatprep.subr.mxu0 0.0
    %72 = vmatpush1.msra.mxu0 %v31
    %73 = vmatprep.subr.mxu0 0.0
    %74 = vmatpush1.msra.mxu0 %v30
    %75 = vmatprep.subr.mxu0 0.0
    %76 = vmatpush1.msra.mxu0 %v29
    %77 = vmatprep.subr.mxu0 0.0
    %78 = vmatpush1.msra.mxu0 %v28
    %79 = vmatprep.subr.mxu0 0.0
    %80 = vmatpush2.msra.mxu0 0.0
    %81 = vmatprep.subr.mxu0 0.0
    %82 = vmatpush2.msra.mxu0 0.0
    %83 = vmatprep.subr.mxu0 0.0
    %84 = vmatpush2.msra.mxu0 0.0
    %85 = vmatprep.subr.mxu0 0.0
    %86 = vmatpush2.msra.mxu0 0.0
    %87 = vmatprep.subr.mxu0 0.0
    %88 = vmatpush2.msra.mxu0 0.0
    %89 = vmatprep.subr.mxu0 0.0
    %90 = vmatpush2.msra.mxu0 0.0
    %91 = vmatprep.subr.mxu0 0.0
    %92 = vmatpush2.msra.mxu0 0.0
    %93 = vmatprep.subr.mxu0 0.0
    %94 = vmatpush2.msra.mxu0 0.0
    %95 = vmatprep.subr.mxu0 0.0
    %96 = vmatpush2.msra.mxu0 0.0
    %97 = vmatprep.subr.mxu0 0.0
    %98 = vmatpush2.msra.mxu0 0.0
    %99 = vmatprep.subr.mxu0 0.0
    %100 = vmatpush2.msra.mxu0 0.0
    %101 = vmatprep.subr.mxu0 0.0
    %102 = vmatpush2.msra.mxu0 0.0
    %103 = vmatprep.subr.mxu0 0.0
    %104 = vmatpush2.msra.mxu0 0.0
    %105 = vmatprep.subr.mxu0 0.0
    %106 = vmatpush2.msra.mxu0 0.0
    %107 = vmatprep.subr.mxu0 0.0
    %108 = vmatpush2.msra.mxu0 0.0
    %109 = vmatprep.subr.mxu0 0.0
    %110 = vmatpush2.msra.mxu0 0.0
    %111 = vmatprep.mubr.f32.mxu0 0.0
    %112 = vmatmul.mubr.f32.gmra.mxu0 %v45
    %v113 = vpop.f32.mrf.mxu0
    %v114 = vadd.f32 %v41, %v113
    %v115 = vpop.f32.mrf.mxu0
    %116 = vdwg.mxu0
    %v117 = vmax.f32 %v114, 0.0
    %v118 = vld [vmem:[%s3] sm:$0xff]
    %v119 = vld [vmem:[%s3 + $0x8] sm:$0xff]
    %v120 = vld [vmem:[%s3 + $0x10] sm:$0xff]
    %v121 = vld [vmem:[%s3 + $0x18] sm:$0xff]
    %v122 = vld [vmem:[%s3 + $0x20] sm:$0xff]
    %v123 = vld [vmem:[%s3 + $0x28] sm:$0xff]
    %v124 = vld [vmem:[%s3 + $0x30] sm:$0xff]
    %v125 = vld [vmem:[%s3 + $0x38] sm:$0xff]
    %v126 = vld [vmem:[%s4] sm:$0x1]
    %v128 = vlaneseq
    %v129 = vshrl.u32 %v128, 7
    %v130 = vsub.s32 0, %v129
    %v131 = vrot.slane %v126, %v130
    %v134 = vsel %vm43, %v117, 0
    %136 = vmatprep.subr.mxu0 0.0
    %137 = vmatpush1.msra.mxu0 0.0
    %138 = vmatprep.subr.mxu0 0.0
    %139 = vmatpush1.msra.mxu0 0.0
    %140 = vmatprep.subr.mxu0 0.0
    %141 = vmatpush1.msra.mxu0 0.0
    %142 = vmatprep.subr.mxu0 0.0
    %143 = vmatpush1.msra.mxu0 0.0
    %144 = vmatprep.subr.mxu0 0.0
    %145 = vmatpush1.msra.mxu0 0.0
    %146 = vmatprep.subr.mxu0 0.0
    %147 = vmatpush1.msra.mxu0 0.0
    %148 = vmatprep.subr.mxu0 0.0
    %149 = vmatpush1.msra.mxu0 0.0
    %150 = vmatprep.subr.mxu0 0.0
    %151 = vmatpush1.msra.mxu0 0.0
    %152 = vmatprep.subr.mxu0 0.0
    %153 = vmatpush1.msra.mxu0 %v125
    %154 = vmatprep.subr.mxu0 0.0
    %155 = vmatpush1.msra.mxu0 %v124
    %156 = vmatprep.subr.mxu0 0.0
    %157 = vmatpush1.msra.mxu0 %v123
    %158 = vmatprep.subr.mxu0 0.0
    %159 = vmatpush1.msra.mxu0 %v122
    %160 = vmatprep.subr.mxu0 0.0
    %161 = vmatpush1.msra.mxu0 %v121
    %162 = vmatprep.subr.mxu0 0.0
    %163 = vmatpush1.msra.mxu0 %v120
    %164 = vmatprep.subr.mxu0 0.0
    %165 = vmatpush1.msra.mxu0 %v119
    %166 = vmatprep.subr.mxu0 0.0
    %167 = vmatpush1.msra.mxu0 %v118
    %168 = vmatprep.subr.mxu0 0.0
    %169 = vmatpush2.msra.mxu0 0.0
    %170 = vmatprep.subr.mxu0 0.0
    %171 = vmatpush2.msra.mxu0 0.0
    %172 = vmatprep.subr.mxu0 0.0
    %173 = vmatpush2.msra.mxu0 0.0
    %174 = vmatprep.subr.mxu0 0.0
    %175 = vmatpush2.msra.mxu0 0.0
    %176 = vmatprep.subr.mxu0 0.0
    %177 = vmatpush2.msra.mxu0 0.0
    %178 = vmatprep.subr.mxu0 0.0
    %179 = vmatpush2.msra.mxu0 0.0
    %180 = vmatprep.subr.mxu0 0.0
    %181 = vmatpush2.msra.mxu0 0.0
    %182 = vmatprep.subr.mxu0 0.0
    %183 = vmatpush2.msra.mxu0 0.0
    %184 = vmatprep.subr.mxu0 0.0
    %185 = vmatpush2.msra.mxu0 0.0
    %186 = vmatprep.subr.mxu0 0.0
    %187 = vmatpush2.msra.mxu0 0.0
    %188 = vmatprep.subr.mxu0 0.0
    %189 = vmatpush2.msra.mxu0 0.0
    %190 = vmatprep.subr.mxu0 0.0
    %191 = vmatpush2.msra.mxu0 0.0
    %192 = vmatprep.subr.mxu0 0.0
    %193 = vmatpush2.msra.mxu0 0.0
    %194 = vmatprep.subr.mxu0 0.0
    %195 = vmatpush2.msra.mxu0 0.0
    %196 = vmatprep.subr.mxu0 0.0
    %197 = vmatpush2.msra.mxu0 0.0
    %198 = vmatprep.subr.mxu0 0.0
    %199 = vmatpush2.msra.mxu0 0.0
    %200 = vmatprep.mubr.f32.mxu0 0.0
    %201 = vmatmul.mubr.f32.gmra.mxu0 %v134
    %v202 = vpop.f32.mrf.mxu0
    %v203 = vadd.f32 %v131, %v202
    %v204 = vpop.f32.mrf.mxu0
    %205 = vdwg.mxu0
    %v206 = vld [vmem:[%s5] sm:$0xff]
    %v207 = vld [vmem:[%s5 + $0x8] sm:$0xff]
    %v208 = vld [vmem:[%s5 + $0x10] sm:$0xff]
    %v209 = vld [vmem:[%s5 + $0x18] sm:$0xff]
    %v210 = vld [vmem:[%s6] sm:$0x1]
    %v212 = vlaneseq
    %v213 = vshrl.u32 %v212, 7
    %v214 = vsub.s32 0, %v213
    %v215 = vrot.slane %v210, %v214
    %vm217 = vcmask 261120
    %v219 = vsel %vm217, %v203, 0
    %221 = vmatprep.subr.mxu0 0.0
    %222 = vmatpush1.msra.mxu0 0.0
    %223 = vmatprep.subr.mxu0 0.0
    %224 = vmatpush1.msra.mxu0 0.0
    %225 = vmatprep.subr.mxu0 0.0
    %226 = vmatpush1.msra.mxu0 0.0
    %227 = vmatprep.subr.mxu0 0.0
    %228 = vmatpush1.msra.mxu0 0.0
    %229 = vmatprep.subr.mxu0 0.0
    %230 = vmatpush1.msra.mxu0 0.0
    %231 = vmatprep.subr.mxu0 0.0
    %232 = vmatpush1.msra.mxu0 0.0
    %233 = vmatprep.subr.mxu0 0.0
    %234 = vmatpush1.msra.mxu0 0.0
    %235 = vmatprep.subr.mxu0 0.0
    %236 = vmatpush1.msra.mxu0 0.0
    %237 = vmatprep.subr.mxu0 0.0
    %238 = vmatpush1.msra.mxu0 0.0
    %239 = vmatprep.subr.mxu0 0.0
    %240 = vmatpush1.msra.mxu0 0.0
    %241 = vmatprep.subr.mxu0 0.0
    %242 = vmatpush1.msra.mxu0 0.0
    %243 = vmatprep.subr.mxu0 0.0
    %244 = vmatpush1.msra.mxu0 0.0
    %245 = vmatprep.subr.mxu0 0.0
    %246 = vmatpush1.msra.mxu0 %v209
    %247 = vmatprep.subr.mxu0 0.0
    %248 = vmatpush1.msra.mxu0 %v208
    %249 = vmatprep.subr.mxu0 0.0
    %250 = vmatpush1.msra.mxu0 %v207
    %251 = vmatprep.subr.mxu0 0.0
    %252 = vmatpush1.msra.mxu0 %v206
    %253 = vmatprep.subr.mxu0 0.0
    %254 = vmatpush2.msra.mxu0 0.0
    %255 = vmatprep.subr.mxu0 0.0
    %256 = vmatpush2.msra.mxu0 0.0
    %257 = vmatprep.subr.mxu0 0.0
    %258 = vmatpush2.msra.mxu0 0.0
    %259 = vmatprep.subr.mxu0 0.0
    %260 = vmatpush2.msra.mxu0 0.0
    %261 = vmatprep.subr.mxu0 0.0
    %262 = vmatpush2.msra.mxu0 0.0
    %263 = vmatprep.subr.mxu0 0.0
    %264 = vmatpush2.msra.mxu0 0.0
    %265 = vmatprep.subr.mxu0 0.0
    %266 = vmatpush2.msra.mxu0 0.0
    %267 = vmatprep.subr.mxu0 0.0
    %268 = vmatpush2.msra.mxu0 0.0
    %269 = vmatprep.subr.mxu0 0.0
    %270 = vmatpush2.msra.mxu0 0.0
    %271 = vmatprep.subr.mxu0 0.0
    %272 = vmatpush2.msra.mxu0 0.0
    %273 = vmatprep.subr.mxu0 0.0
    %274 = vmatpush2.msra.mxu0 0.0
    %275 = vmatprep.subr.mxu0 0.0
    %276 = vmatpush2.msra.mxu0 0.0
    %277 = vmatprep.subr.mxu0 0.0
    %278 = vmatpush2.msra.mxu0 0.0
    %279 = vmatprep.subr.mxu0 0.0
    %280 = vmatpush2.msra.mxu0 0.0
    %281 = vmatprep.subr.mxu0 0.0
    %282 = vmatpush2.msra.mxu0 0.0
    %283 = vmatprep.subr.mxu0 0.0
    %284 = vmatpush2.msra.mxu0 0.0
    %285 = vmatprep.mubr.f32.mxu0 0.0
    %286 = vmatmul.mubr.f32.gmra.mxu0 %v219
    %v287 = vpop.f32.mrf.mxu0
    %v288 = vadd.f32 %v215, %v287
    %v289 = vpop.f32.mrf.mxu0
    %290 = vdwg.mxu0
    %vm291 = vcmask 64512
    %v292 = vsel %vm291, %v288, -inf
    %293 = vmax.xlane.f32.xlu0 %v292
    %v294 = vpop.xlane.xlu0 %293
    %v295 = vsub.f32 %v288, %v294
    %v296 = vmul.f32 %v295, 1.442695
    %v297 = vpow.pop %v296
    %v298 = vsel %vm291, %v297, 0.0
    %299 = vadd.xlane.f32.xlu0 %v298
    %v300 = vpop.xlane.xlu0 %299
    %v301 = vlog2.pop %v300
    %v302 = vmul.f32 %v301, 0.6931472
    %v303 = vsub.f32 %v295, %v302
    %305 = vrot.lane.b32.xlu0 %v303, 32
    %v306 = vpop.permute.xlu0 %305
    %v308 = vsel %vm217, %v203, %v306
    %vm309 = vcmask 326656
    %310 = vst.msk [vmem:[#allocation2] sm:$0xff] %vm309, %v308
    // Predicated region
    $region30: #{tpu_custom_call.1} parent=1 // pred_check
      _
    $region31: #{tpu_custom_call.1} parent=1 // pred_check_branch
      %312 = sbr.rel (0) target = $region33
    $region32: #{tpu_custom_call.1} parent=1 // pred_region
      %s314 = ssub.s32 128, 128
      %315 = vsyncadd [#allocation3], %s314
      %s317 = sshll.u32 [#allocation2], 4
      %s318 = int_to_ptr.vmem [resolvable:$true] %s317
      %320 = dma.vmem_to_hbm [thread:$0]  %s318, 128, %s7, [#allocation3]
    $region33: #{tpu_custom_call.1} parent=1 // pred_fallthru
      _
    // Predicated region
    $region34: #{tpu_custom_call.1} parent=1 // pred_check
      _
    $region35: #{tpu_custom_call.1} parent=1 // pred_check_branch
      %322 = sbr.rel (0) target = $region37
    $region36: #{tpu_custom_call.1} parent=1 // pred_region
      %323 = dma.done [#allocation3], 128
    $region37: #{tpu_custom_call.1} parent=1 // pred_fallthru
      _
    %324 = vsyncpa [#allocation3], 1

</llo_original>
